<compile_context>
chip_gen: v5e
topology: v5e:2x2
jax: 0.10.0
libtpu: 0.0.40
codegen_flags: <defaults>
</compile_context>

<pallas_src>
import numpy as np
import jax
import jax.numpy as jnp
from jax.experimental import pallas as pl
from jax.experimental.pallas import tpu as pltpu

# ----------------------------- synthetic config ------------------------------
PATCH = 14                       # module hard-codes image_size // 14
IMAGE_SIZE = 28                  # small: 2x2 grid of 14x14 patches
IN_CH = 3
HIDDEN = 32                      # model.config.hidden_size (synthetic)
GRID_SIDE = IMAGE_SIZE // PATCH          # == self.size
NUM_PATCHES_NO_CLS = GRID_SIDE ** 2
USE_CLS_TOKEN = True
NUM_PATCHES = NUM_PATCHES_NO_CLS + (1 if USE_CLS_TOKEN else 0)  # == self.num_patches
VIEW_NUM = 4

PATCH_DIM = IN_CH * PATCH * PATCH        # 588 (contraction dim of the patch-embed conv)
K_PAD = 640                              # 5 * 128 — lane-aligned contraction dim
H_PAD = 128                              # lane-dense hidden dim (first HIDDEN lanes valid)
T_PAD = ((NUM_PATCHES + 7) // 8) * 8     # sublane-aligned token count (CLS + patches -> 8)


# ------------------ sincos view embedding (reference, numpy) -----------------
def get_1d_sincos_pos_embed_from_grid(embed_dim, pos):
    assert embed_dim % 2 == 0
    omega = np.arange(embed_dim // 2, dtype=np.float64)
    omega /= embed_dim / 2.0
    omega = 1.0 / 10000 ** omega
    pos = pos.reshape(-1)
    out = np.einsum('m,d->md', pos, omega)
    emb_sin = np.sin(out)
    emb_cos = np.cos(out)
    return np.concatenate([emb_sin, emb_cos], axis=1)


# ------------------------------- fused kernel ---------------------------------
def _vit_seq_kernel(patches_ref, w_ref, b_ref, pos_ref, g_ref, beta_ref, ve_ref, out_ref):
    """Per-sequence: bf16 patch-embed matmul -> +[CLS|pos] -> LayerNorm -> +view_embed.

    Hidden-dim tensors are zero-padded to H_PAD=128 lanes (pad lanes of every operand
    are zero, so LN statistics divided by HIDDEN stay exact).  Token rows are padded
    to T_PAD=8 sublanes; row 0 of the patch matrix is all-zero and pos_ref row 0
    carries (cls_token + pos[0] - patch_bias), so the matmul+bias+pos path produces
    the CLS token in row 0 with no in-kernel concat/insertion.
    """
    x = patches_ref[0]                                                 # (T_PAD, K_PAD) bf16
    # bf16 x bf16 -> f32 accumulate on the MXU (native path on v5e/v6e/v7x).
    tok = jnp.dot(x, w_ref[...], preferred_element_type=jnp.float32) + b_ref[...]
    v = tok + pos_ref[...]                                             # (T_PAD, H_PAD) f32

    # Final LayerNorm over the HIDDEN valid lanes.
    lane = jax.lax.broadcasted_iota(jnp.int32, (1, H_PAD), 1)
    valid = (lane < HIDDEN).astype(jnp.float32)
    mu = jnp.sum(v, axis=-1, keepdims=True) * (1.0 / HIDDEN)
    d = (v - mu) * valid
    var = jnp.sum(d * d, axis=-1, keepdims=True) * (1.0 / HIDDEN)
    h = d * jax.lax.rsqrt(var + 1e-6) * g_ref[...] + beta_ref[...]

    # + per-view embedding; ONE lane- and sublane-dense (T_PAD, H_PAD) store.
    out_ref[...] = (h + ve_ref[0])[None]


# ------------------------------- host-side glue --------------------------------
def _patchify(x):
    """(B, C, Hs, Ws) -> (B, n_patch, C*PATCH*PATCH)  (pure relayout, host glue)."""
    B, C, Hs, Ws = x.shape
    gh, gw = Hs // PATCH, Ws // PATCH
    x = x.reshape(B, C, gh, PATCH, gw, PATCH)
    x = x.transpose(0, 2, 4, 1, 3, 5)                 # (B, gh, gw, C, P, P)
    return x.reshape(B, gh * gw, C * PATCH * PATCH)


def _encode(params, images, mask_img, low, high, ve_rows):
    """One pallas_call, grid over sequences. Returns (B, NUM_PATCHES, HIDDEN)."""
    B, C, Hs, Ws = images.shape
    gh, gw = Hs // PATCH, Ws // PATCH
    n_patch = gh * gw
    T = n_patch + 1
    assert T == NUM_PATCHES and T_PAD >= T
    inv_range = 1.0 / (float(high) - float(low))

    # Host preprocessing (perf-review option: pre-multiply mask into patches in the
    # same host fusion).  normalize (f32) -> mask multiply (torch order) -> bf16 cast
    # fuse with the patchify transpose-copy that must exist anyway; the kernel then
    # streams a single bf16 operand instead of f32 image + 3x channel-duplicated mask.
    x = (images.astype(jnp.float32) - float(low)) * inv_range
    x = x * mask_img.astype(jnp.float32)                                # (B,1,H,W) broadcast
    p = _patchify(x).astype(jnp.bfloat16)                               # (B, n_patch, 588)

    # Padding (588->640 lanes, T->T_PAD rows, CLS slot at row 0) folded into ONE write
    # of the pre-padded buffer — no separate jnp.pad of multiple arrays.
    patches = jnp.zeros((B, T_PAD, K_PAD), jnp.bfloat16)
    patches = patches.at[:, 1:1 + n_patch, :PATCH_DIM].set(p)

    out = pl.pallas_call(
        _vit_seq_kernel,
        grid=(B,),
        out_shape=jax.ShapeDtypeStruct((B, T_PAD, H_PAD), jnp.float32),
        in_specs=[
            pl.BlockSpec((1, T_PAD, K_PAD), lambda b: (b, 0, 0)),   # per-seq patches (bf16)
            pl.BlockSpec((K_PAD, H_PAD), lambda b: (0, 0)),         # patch_w (bf16, resident)
            pl.BlockSpec((1, H_PAD), lambda b: (0, 0)),             # patch_b (f32)
            pl.BlockSpec((T_PAD, H_PAD), lambda b: (0, 0)),         # pos (+CLS folded), f32
            pl.BlockSpec((1, H_PAD), lambda b: (0, 0)),             # ln_gamma
            pl.BlockSpec((1, H_PAD), lambda b: (0, 0)),             # ln_beta
            pl.BlockSpec((1, 1, H_PAD), lambda b: (b, 0, 0)),       # per-seq view embed
        ],
        out_specs=pl.BlockSpec((1, T_PAD, H_PAD), lambda b: (b, 0, 0)),
        compiler_params=pltpu.CompilerParams(
            dimension_semantics=("parallel",),          # shard sequences across TCs (v7x)
            vmem_limit_bytes=32 * 1024 * 1024),         # explicit, fits v7x 64 MiB physical
    )(patches, params["patch_w"], params["patch_b"], params["pos_cls"],
      params["ln_gamma"], params["ln_beta"], ve_rows)
    return out[:, :T, :HIDDEN]


# ------------------------------ parameter init --------------------------------
def init_image_encoder_params(key):
    k1, k2, k3 = jax.random.split(key, 3)
    w = jax.random.normal(k1, (PATCH_DIM, HIDDEN), jnp.float32) * 0.02
    cls = jax.random.normal(k2, (1, HIDDEN), jnp.float32) * 0.02
    pos = jax.random.normal(k3, (NUM_PATCHES, HIDDEN), jnp.float32) * 0.02
    b = jnp.zeros((HIDDEN,), jnp.float32)              # patch-embed conv bias (synthetic)

    patch_w = jnp.zeros((K_PAD, H_PAD), jnp.float32).at[:PATCH_DIM, :HIDDEN].set(w)
    patch_b = jnp.zeros((1, H_PAD), jnp.float32).at[0, :HIDDEN].set(b)

    # pos_cls: pos-embed rows [CLS, patch_0..patch_{n-1}, 0-pad...] with
    # (cls_token - patch_b) folded into row 0.  Row 0 of the patch matrix is all-zero,
    # so (dot + bias + pos_cls) yields exactly cls_token + pos[0] there — no in-kernel
    # CLS insertion / concat / partial store needed.
    pos_cls = jnp.zeros((T_PAD, H_PAD), jnp.float32)
    pos_cls = pos_cls.at[:NUM_PATCHES, :HIDDEN].set(pos)
    pos_cls = pos_cls.at[0, :HIDDEN].add(cls[0] - b)

    params = {
        "patch_w": patch_w.astype(jnp.bfloat16),        # bf16 MXU operand
        "patch_b": patch_b,
        "pos_cls": pos_cls,
        "ln_gamma": jnp.zeros((1, H_PAD), jnp.float32).at[0, :HIDDEN].set(1.0),
        "ln_beta": jnp.zeros((1, H_PAD), jnp.float32),
    }
    # view embedding, as in __init__; stored per-view (V, H_PAD) — broadcast along T
    # inside the kernel (no host repeat over tokens).
    vpos = np.arange(VIEW_NUM, dtype=np.float32)
    ve = get_1d_sincos_pos_embed_from_grid(HIDDEN, vpos).astype(np.float32)   # (4, HIDDEN)
    ve_pad = np.zeros((VIEW_NUM, H_PAD), np.float32)
    ve_pad[:, :HIDDEN] = ve
    params["view_embed"] = jnp.asarray(ve_pad)
    return params


# ------------------------------- forward pass ---------------------------------
def image_encoder_forward(params, image=None, mask=None, value_range=(-1, 1),
                          view_dict=None, use_cls_token=USE_CLS_TOKEN):
    if view_dict is None:
        B = image.shape[0]
        low, high = value_range if value_range is not None else (0.0, 1.0)
        if mask is None:
            mask_img = jnp.ones((B, 1, image.shape[2], image.shape[3]), jnp.float32)
        else:
            mask_img = mask.astype(jnp.float32)
        # TODO(synk): torchvision Resize/CenterCrop (bilinear, antialias) for unsupported
        # sizes has no clean Pallas equivalent; inputs are assumed at model resolution
        # (equivalent to the has_guidance_embed=True path).
        ve = jnp.zeros((B, 1, H_PAD), jnp.float32)            # no view embedding here
        hidden = _encode(params, image, mask_img, low, high, ve)        # (B, T, 32)
        if not use_cls_token:
            hidden = hidden[:, 1:, :]
        return hidden
    else:
        rgbs, alphas = [], []
        for view_tag, view_image in view_dict.items():        # insertion order, as in torch
            if view_image is None:
                continue
            view_image = view_image.astype(jnp.float32)
            if view_image.shape[1] == 4:
                # alpha channel multiplies rgb (low=0, scale=1 path)
                rgbs.append(view_image[:, :3])
                alphas.append(view_image[:, 3:4])
            else:
                rgbs.append(view_image)
                alphas.append(jnp.ones_like(view_image[:, :1]))
        n_views = len(rgbs)
        images = jnp.concatenate(rgbs, axis=0)                 # (V, C, Hs, Ws)
        alpha_img = jnp.concatenate(alphas, axis=0)            # (V, 1, Hs, Ws)
        # torch quirk preserved: when n_views != 4 it uses the FIRST n_views embeddings
        # (range(len(view_indexes))), not the views' actual indices; identical when == 4.
        ve = params["view_embed"][:n_views][:, None, :]        # (V, 1, H_PAD)
        hidden = _encode(params, images, alpha_img, 0.0, 1.0, ve)       # (V, T, 32)
        return hidden.reshape(1, n_views * hidden.shape[1], HIDDEN)


# ----------------------------------- main --------------------------------------
if __name__ == "__main__":
    key = jax.random.PRNGKey(0)
    kp, ki, km, kv = jax.random.split(key, 4)
    params = init_image_encoder_params(kp)

    # Path A: plain image batch with value-range normalization + mask.
    image = jax.random.uniform(ki, (2, IN_CH, IMAGE_SIZE, IMAGE_SIZE), jnp.float32,
                               minval=-1.0, maxval=1.0)
    mask = (jax.random.uniform(km, (2, 1, IMAGE_SIZE, IMAGE_SIZE)) > 0.5).astype(jnp.float32)
    out_a = image_encoder_forward(params, image=image, mask=mask, value_range=(-1, 1))
    out_a = jax.block_until_ready(out_a)
    assert out_a.shape == (2, NUM_PATCHES, HIDDEN), out_a.shape
    assert bool(jnp.all(jnp.isfinite(out_a)))

    # Path B: multi-view dict (3 views; 'front' carries an alpha channel).
    kv1, kv2, kv3 = jax.random.split(kv, 3)
    view_dict = {
        "front": jax.random.uniform(kv1, (1, 4, IMAGE_SIZE, IMAGE_SIZE), jnp.float32),
        "left":  jax.random.uniform(kv2, (1, IN_CH, IMAGE_SIZE, IMAGE_SIZE), jnp.float32),
        "back":  jax.random.uniform(kv3, (1, IN_CH, IMAGE_SIZE, IMAGE_SIZE), jnp.float32),
        "right": None,
    }
    out_b = image_encoder_forward(params, view_dict=view_dict)
    out_b = jax.block_until_ready(out_b)
    assert out_b.shape == (1, 3 * NUM_PATCHES, HIDDEN), out_b.shape
    assert bool(jnp.all(jnp.isfinite(out_b)))

    print("KERNEL_OK")
</pallas_src>

<mosaic_0001>
module attributes {stable_mosaic.version = 11 : i64} {
  func.func @_vit_seq_kernel(%arg0: i32, %arg1: memref<1x8x640xbf16, #tpu.memory_space<vmem>>, %arg2: memref<640x128xbf16, #tpu.memory_space<vmem>>, %arg3: memref<1x128xf32, #tpu.memory_space<vmem>>, %arg4: memref<8x128xf32, #tpu.memory_space<vmem>>, %arg5: memref<1x128xf32, #tpu.memory_space<vmem>>, %arg6: memref<1x128xf32, #tpu.memory_space<vmem>>, %arg7: memref<1x1x128xf32, #tpu.memory_space<vmem>>, %arg8: memref<1x8x128xf32, #tpu.memory_space<vmem>>) attributes {dimension_semantics = [#tpu.dimension_semantics<parallel>], iteration_bounds = array<i64: 2>, scalar_prefetch = 0 : i64, scratch_operands = 0 : i64, tpu.core_type = #tpu.core_type<tc>, window_params = [{transform_indices = @transform_0, window_bounds = array<i64: 1, 8, 640>}, {pipeline_mode = #tpu.pipeline_mode<synchronous>, transform_indices = @transform_1, window_bounds = array<i64: 640, 128>}, {pipeline_mode = #tpu.pipeline_mode<synchronous>, transform_indices = @transform_2, window_bounds = array<i64: 1, 128>}, {pipeline_mode = #tpu.pipeline_mode<synchronous>, transform_indices = @transform_3, window_bounds = array<i64: 8, 128>}, {pipeline_mode = #tpu.pipeline_mode<synchronous>, transform_indices = @transform_4, window_bounds = array<i64: 1, 128>}, {pipeline_mode = #tpu.pipeline_mode<synchronous>, transform_indices = @transform_5, window_bounds = array<i64: 1, 128>}, {transform_indices = @transform_6, window_bounds = array<i64: 1, 1, 128>}, {transform_indices = @transform_7, window_bounds = array<i64: 1, 8, 128>}]} {
    %c0 = arith.constant 0 : index
    %c0_0 = arith.constant 0 : index
    %c0_1 = arith.constant 0 : index
    %0 = vector.load %arg1[%c0, %c0_0, %c0_1] : memref<1x8x640xbf16, #tpu.memory_space<vmem>>, vector<1x8x640xbf16>
    %1 = vector.shape_cast %0 : vector<1x8x640xbf16> to vector<8x640xbf16>
    %c0_2 = arith.constant 0 : index
    %c0_3 = arith.constant 0 : index
    %2 = vector.load %arg2[%c0_2, %c0_3] : memref<640x128xbf16, #tpu.memory_space<vmem>>, vector<640x128xbf16>
    %cst = arith.constant dense<0.000000e+00> : vector<8x128xf32>
    %3 = tpu.matmul %1, %2, %cst {dimension_numbers = #tpu.dot_dimension_numbers<[1], [0], [0], [1], [0, 0, 1, 1], [], []>} : vector<8x640xbf16>, vector<640x128xbf16>, vector<8x128xf32> -> vector<8x128xf32>
    %c0_4 = arith.constant 0 : index
    %c0_5 = arith.constant 0 : index
    %4 = vector.load %arg3[%c0_4, %c0_5] : memref<1x128xf32, #tpu.memory_space<vmem>>, vector<1x128xf32>
    %5 = vector.broadcast %4 : vector<1x128xf32> to vector<8x128xf32>
    %6 = arith.addf %3, %5 : vector<8x128xf32>
    %c0_6 = arith.constant 0 : index
    %c0_7 = arith.constant 0 : index
    %7 = vector.load %arg4[%c0_6, %c0_7] : memref<8x128xf32, #tpu.memory_space<vmem>>, vector<8x128xf32>
    %8 = arith.addf %6, %7 : vector<8x128xf32>
    %9 = tpu.iota {dimensions = array<i32: 1>} : vector<1x128xi32>
    %c32_i32 = arith.constant 32 : i32
    %10 = vector.broadcast %c32_i32 : i32 to vector<1x128xi32>
    %11 = arith.cmpi slt, %9, %10 : vector<1x128xi32>
    %12 = arith.extui %11 : vector<1x128xi1> to vector<1x128xi32>
    %13 = arith.sitofp %12 : vector<1x128xi32> to vector<1x128xf32>
    %cst_8 = arith.constant dense<0.000000e+00> : vector<8xf32>
    %14 = vector.multi_reduction <add>, %8, %cst_8 [1] : vector<8x128xf32> to vector<8xf32>
    %15 = vector.shape_cast %14 : vector<8xf32> to vector<8x1xf32>
    %cst_9 = arith.constant 3.125000e-02 : f32
    %16 = vector.broadcast %cst_9 : f32 to vector<8x1xf32>
    %17 = arith.mulf %15, %16 : vector<8x1xf32>
    %18 = vector.broadcast %17 : vector<8x1xf32> to vector<8x128xf32>
    %19 = arith.subf %8, %18 : vector<8x128xf32>
    %20 = vector.broadcast %13 : vector<1x128xf32> to vector<8x128xf32>
    %21 = arith.mulf %19, %20 : vector<8x128xf32>
    %22 = arith.mulf %21, %21 : vector<8x128xf32>
    %cst_10 = arith.constant dense<0.000000e+00> : vector<8xf32>
    %23 = vector.multi_reduction <add>, %22, %cst_10 [1] : vector<8x128xf32> to vector<8xf32>
    %24 = vector.shape_cast %23 : vector<8xf32> to vector<8x1xf32>
    %cst_11 = arith.constant 3.125000e-02 : f32
    %25 = vector.broadcast %cst_11 : f32 to vector<8x1xf32>
    %26 = arith.mulf %24, %25 : vector<8x1xf32>
    %cst_12 = arith.constant 9.99999997E-7 : f32
    %27 = vector.broadcast %cst_12 : f32 to vector<8x1xf32>
    %28 = arith.addf %26, %27 : vector<8x1xf32>
    %29 = math.rsqrt %28 : vector<8x1xf32>
    %30 = vector.broadcast %29 : vector<8x1xf32> to vector<8x128xf32>
    %31 = arith.mulf %21, %30 : vector<8x128xf32>
    %c0_13 = arith.constant 0 : index
    %c0_14 = arith.constant 0 : index
    %32 = vector.load %arg5[%c0_13, %c0_14] : memref<1x128xf32, #tpu.memory_space<vmem>>, vector<1x128xf32>
    %33 = vector.broadcast %32 : vector<1x128xf32> to vector<8x128xf32>
    %34 = arith.mulf %31, %33 : vector<8x128xf32>
    %c0_15 = arith.constant 0 : index
    %c0_16 = arith.constant 0 : index
    %35 = vector.load %arg6[%c0_15, %c0_16] : memref<1x128xf32, #tpu.memory_space<vmem>>, vector<1x128xf32>
    %36 = vector.broadcast %35 : vector<1x128xf32> to vector<8x128xf32>
    %37 = arith.addf %34, %36 : vector<8x128xf32>
    %c0_17 = arith.constant 0 : index
    %c0_18 = arith.constant 0 : index
    %c0_19 = arith.constant 0 : index
    %38 = vector.load %arg7[%c0_17, %c0_18, %c0_19] : memref<1x1x128xf32, #tpu.memory_space<vmem>>, vector<1x1x128xf32>
    %39 = vector.shape_cast %38 : vector<1x1x128xf32> to vector<1x128xf32>
    %40 = vector.broadcast %39 : vector<1x128xf32> to vector<8x128xf32>
    %41 = arith.addf %37, %40 : vector<8x128xf32>
    %42 = vector.shape_cast %41 : vector<8x128xf32> to vector<1x8x128xf32>
    %c0_20 = arith.constant 0 : index
    %c0_21 = arith.constant 0 : index
    %c0_22 = arith.constant 0 : index
    %43 = vector.load %arg8[%c0_20, %c0_21, %c0_22] : memref<1x8x128xf32, #tpu.memory_space<vmem>>, vector<1x8x128xf32>
    tpu.vector_store %arg8[%c0_20, %c0_21, %c0_22], %42 {strides = array<i32>} : memref<1x8x128xf32, #tpu.memory_space<vmem>>, vector<1x8x128xf32>,
    return
  }
  func.func @transform_0(%arg0: i32) -> (i32, i32, i32) {
    %c0_i32 = arith.constant 0 : i32
    %c0_i32_0 = arith.constant 0 : i32
    %c0_i32_1 = arith.constant 0 : i32
    return %arg0, %c0_i32, %c0_i32_0 : i32, i32, i32
  }
  func.func @transform_1(%arg0: i32) -> (i32, i32) {
    %c0_i32 = arith.constant 0 : i32
    %c0_i32_0 = arith.constant 0 : i32
    %c0_i32_1 = arith.constant 0 : i32
    return %c0_i32, %c0_i32_0 : i32, i32
  }
  func.func @transform_2(%arg0: i32) -> (i32, i32) {
    %c0_i32 = arith.constant 0 : i32
    %c0_i32_0 = arith.constant 0 : i32
    %c0_i32_1 = arith.constant 0 : i32
    return %c0_i32, %c0_i32_0 : i32, i32
  }
  func.func @transform_3(%arg0: i32) -> (i32, i32) {
    %c0_i32 = arith.constant 0 : i32
    %c0_i32_0 = arith.constant 0 : i32
    %c0_i32_1 = arith.constant 0 : i32
    return %c0_i32, %c0_i32_0 : i32, i32
  }
  func.func @transform_4(%arg0: i32) -> (i32, i32) {
    %c0_i32 = arith.constant 0 : i32
    %c0_i32_0 = arith.constant 0 : i32
    %c0_i32_1 = arith.constant 0 : i32
    return %c0_i32, %c0_i32_0 : i32, i32
  }
  func.func @transform_5(%arg0: i32) -> (i32, i32) {
    %c0_i32 = arith.constant 0 : i32
    %c0_i32_0 = arith.constant 0 : i32
    %c0_i32_1 = arith.constant 0 : i32
    return %c0_i32, %c0_i32_0 : i32, i32
  }
  func.func @transform_6(%arg0: i32) -> (i32, i32, i32) {
    %c0_i32 = arith.constant 0 : i32
    %c0_i32_0 = arith.constant 0 : i32
    %c0_i32_1 = arith.constant 0 : i32
    return %arg0, %c0_i32, %c0_i32_0 : i32, i32, i32
  }
  func.func @transform_7(%arg0: i32) -> (i32, i32, i32) {
    %c0_i32 = arith.constant 0 : i32
    %c0_i32_0 = arith.constant 0 : i32
    %c0_i32_1 = arith.constant 0 : i32
    return %arg0, %c0_i32, %c0_i32_0 : i32, i32, i32
  }
}

</mosaic_0001>

<llo_original>
// kernel: tpu_custom_call.1
$region0: #{tpu_custom_call.1}
  #allocation0 [shape = 'u32[]', space=smem, size = 0x4, offset = 0x4, fixed_abs, tag = 'smem constant byte address 0x4 - core index']
  #allocation1 [shape = 'u32[72,128]{1,0:T(1,128)}', space=vmem, size = 0x9000, scoped, tag = 'internal scratch']
  %s0 = inlined_call_operand.hbm [shape: bf16[2,8,640], index: 0, kind: input, shape index: {}]
  %s1 = inlined_call_operand.hbm [shape: bf16[640,128], index: 1, kind: input, shape index: {}]
  %s2 = inlined_call_operand.vmem [shape: f32[1,128], index: 2, kind: input, shape index: {}]
  %s3 = inlined_call_operand.hbm [shape: f32[8,128], index: 3, kind: input, shape index: {}]
  %s4 = inlined_call_operand.hbm [shape: f32[1,128], index: 4, kind: input, shape index: {}]
  %s5 = inlined_call_operand.vmem [shape: f32[1,128], index: 5, kind: input, shape index: {}]
  %s6 = inlined_call_operand.vmem [shape: f32[2,1,128], index: 6, kind: input, shape index: {}]
  %s7 = inlined_call_operand.hbm [shape: f32[2,8,128], index: 7, kind: output, shape index: {}]
  %s8 = sld [smem:[#allocation0]]
  $region77: #{tpu_custom_call.1} parent=0
    _
  %s10 = ssub.s32 1, %s8
  %s11 = scalar_select 0, %s10, %s8
  $region1: #{tpu_custom_call.1} parent=0
    #allocation2 [shape = 'u8[20480]{0}', space=vmem, size = 0x5000, scoped, tag = 'input window, operand 0']
    #allocation3 [shape = 's32[2]{0}', space=sflag, size = 0x8, scoped, tag = 'scoped memory for tpu_custom_call.1']
    #allocation4 [shape = 's32[2]{0}', space=sflag, size = 0x8, scoped, tag = 'scoped memory for tpu_custom_call.1']
    #allocation5 [shape = 'u8[163840]{0}', space=vmem, size = 0x28000, scoped, tag = 'input window, operand 1, single buffered']
    #allocation6 [shape = 's32[1]{0}', space=sflag, size = 0x4, scoped, tag = 'scoped memory for tpu_custom_call.1']
    #allocation7 [shape = 'u8[4096]{0}', space=vmem, size = 0x1000, scoped, tag = 'input window, operand 3, single buffered']
    #allocation8 [shape = 'u8[512]{0}', space=vmem, size = 0x400, scoped, tag = 'input window, operand 4, single buffered']
    #allocation9 [shape = 's32[1]{0}', space=sflag, size = 0x4, scoped, tag = 'scoped memory for tpu_custom_call.1']
    #allocation10 [shape = 'u8[8192]{0}', space=vmem, size = 0x2000, scoped, tag = 'output window, operand 0']
    %12 = vsyncpa [#allocation3], 0
    %s13 = scalar_lea.sflag [#allocation3], 1
    %14 = vsyncpa %s13, 0
    %15 = vsyncpa [#allocation6], 0
    %16 = vsyncpa [#allocation9], 0
    %17 = vsyncpa [#allocation4], 0
    %s18 = scalar_lea.sflag [#allocation4], 1
    %19 = vsyncpa %s18, 0
    loop: start=0, step=1, limit=4
    $region2: #{tpu_custom_call.1} parent=1 // loop_pre_header
      _
    $region3: #{tpu_custom_call.1} parent=1 // loop_header
      %s21 = sphi 0, %s25
      %p22 = scmp.ge.s32.totalorder %s21, 4
      %s31 = sphi 0, %s33
      %s34 = sphi 0, %s31
      %s35 = sphi 0, %s34
      %s51 = sphi 0, %s35
      %s55 = sphi 0, %s55
      %s57 = sphi 0, %s55
      %s58 = sphi 0, %s57
      %s72 = sphi 0, %s58
      %s76 = sphi 0, %s76
      %s78 = sphi 0, %s76
      %s79 = sphi 0, %s78
      %s93 = sphi 0, %s79
      %s97 = sphi 0, %s97
      %s99 = sphi 0, %s97
      %s100 = sphi 0, %s99
      %s114 = sphi 0, %s100
      %s118 = sphi 0, %s118
      %s120 = sphi 0, %s118
      %s121 = sphi 0, %s120
      %s135 = sphi 0, %s121
      %s139 = sphi 0, %s139
      %s141 = sphi 0, %s139
      %s142 = sphi 0, %s141
      %s156 = sphi 0, %s142
      %s162 = sphi 0, %s164
      %s165 = sphi 0, %s162
      %s166 = sphi 0, %s165
      %s182 = sphi 0, %s166
      %s188 = sphi 0, %s190
      %s191 = sphi 0, %s188
      %s192 = sphi 0, %s191
      %s208 = sphi 0, %s192
    $region4: #{tpu_custom_call.1} parent=1 // loop_header_branch
      %24 = sbr.rel (%p22) target = $region8
    $region5: #{tpu_custom_call.1} parent=1 // loop_body
      %s26 = ssub.s32 %s21, 1
      %s27 = ssub.s32 %s21, 2
      %s28 = sadd.s32 %s21, 1
      %s29 = ssub.s32 %s21, %s28
      %p30 = scmp.eq.s32.totalorder %s29, 0
      %s32 = sadd.s32 %s31, 1
      %s33 = scalar_select %p30, %s31, %s32
      %p36 = pneg %p30
      %p37 = scmp.eq.s32.totalorder %s21, 1
      %p38 = por %p36, %p37
      %p39 = scmp.ne.s32.totalorder %s31, %s34
      %p40 = scmp.eq.s32.totalorder %s21, 0
      %p41 = por %p39, %p40
      %p42 = scmp.ne.s32.totalorder %s31, %s34
      %p43 = scmp.eq.s32.totalorder %s26, 1
      %p44 = por %p42, %p43
      %p45 = scmp.ne.s32.totalorder %s34, %s35
      %p46 = scmp.eq.s32.totalorder %s26, 0
      %p47 = por %p45, %p46
      %p48 = scmp.ne.s32.totalorder %s34, %s35
      %p49 = scmp.eq.s32.totalorder %s27, 1
      %p50 = por %p48, %p49
      %p52 = scmp.ne.s32.totalorder %s35, %s51
      %p53 = scmp.eq.s32.totalorder %s27, 0
      %p54 = por %p52, %p53
      %s56 = sadd.s32 %s55, 1
      %p59 = scmp.eq.s32.totalorder %s21, 1
      %p60 = scmp.ne.s32.totalorder %s55, %s57
      %p61 = scmp.eq.s32.totalorder %s21, 0
      %p62 = por %p60, %p61
      %p63 = scmp.ne.s32.totalorder %s55, %s57
      %p64 = scmp.eq.s32.totalorder %s26, 1
      %p65 = por %p63, %p64
      %p66 = scmp.ne.s32.totalorder %s57, %s58
      %p67 = scmp.eq.s32.totalorder %s26, 0
      %p68 = por %p66, %p67
      %p69 = scmp.ne.s32.totalorder %s57, %s58
      %p70 = scmp.eq.s32.totalorder %s27, 1
      %p71 = por %p69, %p70
      %p73 = scmp.ne.s32.totalorder %s58, %s72
      %p74 = scmp.eq.s32.totalorder %s27, 0
      %p75 = por %p73, %p74
      %s77 = sadd.s32 %s76, 1
      %p80 = scmp.eq.s32.totalorder %s21, 1
      %p81 = scmp.ne.s32.totalorder %s76, %s78
      %p82 = scmp.eq.s32.totalorder %s21, 0
      %p83 = por %p81, %p82
      %p84 = scmp.ne.s32.totalorder %s76, %s78
      %p85 = scmp.eq.s32.totalorder %s26, 1
      %p86 = por %p84, %p85
      %p87 = scmp.ne.s32.totalorder %s78, %s79
      %p88 = scmp.eq.s32.totalorder %s26, 0
      %p89 = por %p87, %p88
      %p90 = scmp.ne.s32.totalorder %s78, %s79
      %p91 = scmp.eq.s32.totalorder %s27, 1
      %p92 = por %p90, %p91
      %p94 = scmp.ne.s32.totalorder %s79, %s93
      %p95 = scmp.eq.s32.totalorder %s27, 0
      %p96 = por %p94, %p95
      %s98 = sadd.s32 %s97, 1
      %p101 = scmp.eq.s32.totalorder %s21, 1
      %p102 = scmp.ne.s32.totalorder %s97, %s99
      %p103 = scmp.eq.s32.totalorder %s21, 0
      %p104 = por %p102, %p103
      %p105 = scmp.ne.s32.totalorder %s97, %s99
      %p106 = scmp.eq.s32.totalorder %s26, 1
      %p107 = por %p105, %p106
      %p108 = scmp.ne.s32.totalorder %s99, %s100
      %p109 = scmp.eq.s32.totalorder %s26, 0
      %p110 = por %p108, %p109
      %p111 = scmp.ne.s32.totalorder %s99, %s100
      %p112 = scmp.eq.s32.totalorder %s27, 1
      %p113 = por %p111, %p112
      %p115 = scmp.ne.s32.totalorder %s100, %s114
      %p116 = scmp.eq.s32.totalorder %s27, 0
      %p117 = por %p115, %p116
      %s119 = sadd.s32 %s118, 1
      %p122 = scmp.eq.s32.totalorder %s21, 1
      %p123 = scmp.ne.s32.totalorder %s118, %s120
      %p124 = scmp.eq.s32.totalorder %s21, 0
      %p125 = por %p123, %p124
      %p126 = scmp.ne.s32.totalorder %s118, %s120
      %p127 = scmp.eq.s32.totalorder %s26, 1
      %p128 = por %p126, %p127
      %p129 = scmp.ne.s32.totalorder %s120, %s121
      %p130 = scmp.eq.s32.totalorder %s26, 0
      %p131 = por %p129, %p130
      %p132 = scmp.ne.s32.totalorder %s120, %s121
      %p133 = scmp.eq.s32.totalorder %s27, 1
      %p134 = por %p132, %p133
      %p136 = scmp.ne.s32.totalorder %s121, %s135
      %p137 = scmp.eq.s32.totalorder %s27, 0
      %p138 = por %p136, %p137
      %s140 = sadd.s32 %s139, 1
      %p143 = scmp.eq.s32.totalorder %s21, 1
      %p144 = scmp.ne.s32.totalorder %s139, %s141
      %p145 = scmp.eq.s32.totalorder %s21, 0
      %p146 = por %p144, %p145
      %p147 = scmp.ne.s32.totalorder %s139, %s141
      %p148 = scmp.eq.s32.totalorder %s26, 1
      %p149 = por %p147, %p148
      %p150 = scmp.ne.s32.totalorder %s141, %s142
      %p151 = scmp.eq.s32.totalorder %s26, 0
      %p152 = por %p150, %p151
      %p153 = scmp.ne.s32.totalorder %s141, %s142
      %p154 = scmp.eq.s32.totalorder %s27, 1
      %p155 = por %p153, %p154
      %p157 = scmp.ne.s32.totalorder %s142, %s156
      %p158 = scmp.eq.s32.totalorder %s27, 0
      %p159 = por %p157, %p158
      %s160 = ssub.s32 %s21, %s28
      %p161 = scmp.eq.s32.totalorder %s160, 0
      %s163 = sadd.s32 %s162, 1
      %s164 = scalar_select %p161, %s162, %s163
      %p167 = pneg %p161
      %p168 = scmp.eq.s32.totalorder %s21, 1
      %p169 = por %p167, %p168
      %p170 = scmp.ne.s32.totalorder %s162, %s165
      %p171 = scmp.eq.s32.totalorder %s21, 0
      %p172 = por %p170, %p171
      %p173 = scmp.ne.s32.totalorder %s162, %s165
      %p174 = scmp.eq.s32.totalorder %s26, 1
      %p175 = por %p173, %p174
      %p176 = scmp.ne.s32.totalorder %s165, %s166
      %p177 = scmp.eq.s32.totalorder %s26, 0
      %p178 = por %p176, %p177
      %p179 = scmp.ne.s32.totalorder %s165, %s166
      %p180 = scmp.eq.s32.totalorder %s27, 1
      %p181 = por %p179, %p180
      %p183 = scmp.ne.s32.totalorder %s166, %s182
      %p184 = scmp.eq.s32.totalorder %s27, 0
      %p185 = por %p183, %p184
      %s186 = ssub.s32 %s21, %s28
      %p187 = scmp.eq.s32.totalorder %s186, 0
      %s189 = sadd.s32 %s188, 1
      %s190 = scalar_select %p187, %s188, %s189
      %p193 = pneg %p187
      %p194 = scmp.eq.s32.totalorder %s21, 1
      %p195 = por %p193, %p194
      %p196 = scmp.ne.s32.totalorder %s188, %s191
      %p197 = scmp.eq.s32.totalorder %s21, 0
      %p198 = por %p196, %p197
      %p199 = scmp.ne.s32.totalorder %s188, %s191
      %p200 = scmp.eq.s32.totalorder %s26, 1
      %p201 = por %p199, %p200
      %p202 = scmp.ne.s32.totalorder %s191, %s192
      %p203 = scmp.eq.s32.totalorder %s26, 0
      %p204 = por %p202, %p203
      %p205 = scmp.ne.s32.totalorder %s191, %s192
      %p206 = scmp.eq.s32.totalorder %s27, 1
      %p207 = por %p205, %p206
      %p209 = scmp.ne.s32.totalorder %s192, %s208
      %p210 = scmp.eq.s32.totalorder %s27, 0
      %p211 = por %p209, %p210
      %p212 = scmp.le.s32.totalorder 1, %s21
      %p213 = scmp.lt.s32.totalorder %s21, 3
      %p214 = pnand %p212, %p213
      %p215 = pneg %p214
      // Predicated region
      $region9: #{tpu_custom_call.1} parent=5 // pred_check
        _
      $region10: #{tpu_custom_call.1} parent=5 // pred_check_branch
        %217 = sbr.rel (%p214) target = $region12
      $region11: #{tpu_custom_call.1} parent=5 // pred_region
        %s218 = ssub.s32 %s21, 1
        // Predicated region
        $region13: #{tpu_custom_call.1} parent=11 // pred_check
          %p219 = pneg %p68
        $region14: #{tpu_custom_call.1} parent=11 // pred_check_branch
          %221 = sbr.rel (%p219) target = $region16
        $region15: #{tpu_custom_call.1} parent=11 // pred_region
          %223 = vsyncadd [#allocation6], 0
          %s224 = sshll.u32 %s1, 4
          %s225 = int_to_ptr.hbm [resolvable:$true] %s224
          %s226 = sshll.u32 [#allocation5], 4
          %s227 = int_to_ptr.vmem [resolvable:$true] %s226
          %232 = dma.hbm_to_vmem [thread:$0]  %s225, 5120, %s227, [#allocation6], 64, 64, 4
        $region16: #{tpu_custom_call.1} parent=11 // pred_fallthru
          _
        // Predicated region
        $region17: #{tpu_custom_call.1} parent=11 // pred_check
          %p233 = pneg %p89
        $region18: #{tpu_custom_call.1} parent=11 // pred_check_branch
          %235 = sbr.rel (%p233) target = $region20
        $region19: #{tpu_custom_call.1} parent=11 // pred_region
          _
        $region20: #{tpu_custom_call.1} parent=11 // pred_fallthru
          _
        // Predicated region
        $region21: #{tpu_custom_call.1} parent=11 // pred_check
          %p236 = pneg %p110
        $region22: #{tpu_custom_call.1} parent=11 // pred_check_branch
          %238 = sbr.rel (%p236) target = $region24
        $region23: #{tpu_custom_call.1} parent=11 // pred_region
          %240 = vsyncadd [#allocation6], 0
          %s242 = sshll.u32 %s3, 4
          %s243 = int_to_ptr.hbm [resolvable:$true] %s242
          %s244 = sshll.u32 [#allocation7], 4
          %s245 = int_to_ptr.vmem [resolvable:$true] %s244
          %247 = dma.hbm_to_vmem [thread:$0]  %s243, 128, %s245, [#allocation6]
        $region24: #{tpu_custom_call.1} parent=11 // pred_fallthru
          _
        // Predicated region
        $region25: #{tpu_custom_call.1} parent=11 // pred_check
          %p248 = pneg %p131
        $region26: #{tpu_custom_call.1} parent=11 // pred_check_branch
          %250 = sbr.rel (%p248) target = $region28
        $region27: #{tpu_custom_call.1} parent=11 // pred_region
          %252 = vsyncadd [#allocation9], 0
          %s254 = sshll.u32 %s4, 4
          %s255 = int_to_ptr.hbm [resolvable:$true] %s254
          %s256 = sshll.u32 [#allocation8], 4
          %s257 = int_to_ptr.vmem [resolvable:$true] %s256
          %259 = dma.hbm_to_vmem [thread:$0]  %s255, 16, %s257, [#allocation9]
        $region28: #{tpu_custom_call.1} parent=11 // pred_fallthru
          _
        // Predicated region
        $region29: #{tpu_custom_call.1} parent=11 // pred_check
          %p260 = pneg %p152
        $region30: #{tpu_custom_call.1} parent=11 // pred_check_branch
          %262 = sbr.rel (%p260) target = $region32
        $region31: #{tpu_custom_call.1} parent=11 // pred_region
          _
        $region32: #{tpu_custom_call.1} parent=11 // pred_fallthru
          _
      $region12: #{tpu_custom_call.1} parent=5 // pred_fallthru
        _
      %p263 = scmp.lt.s32.totalorder %s21, 2
      // Predicated region
      $region33: #{tpu_custom_call.1} parent=5 // pred_check
        %p264 = pneg %p263
      $region34: #{tpu_custom_call.1} parent=5 // pred_check_branch
        %266 = sbr.rel (%p264) target = $region36
      $region35: #{tpu_custom_call.1} parent=5 // pred_region
        // Predicated region
        $region37: #{tpu_custom_call.1} parent=35 // pred_check
          %p267 = pneg %p41
        $region38: #{tpu_custom_call.1} parent=35 // pred_check_branch
          %269 = sbr.rel (%p267) target = $region40
        $region39: #{tpu_custom_call.1} parent=35 // pred_region
          %s270 = sand.u32 %s31, 1
          %s271 = scalar_lea.sflag [#allocation3], %s270
          %s272 = sand.u32 %s31, 1
          %s273 = smul.addr %s272, 20
          %s274 = scalar_lea.vmem [#allocation2], %s273
          %276 = vsyncadd %s271, 0
          %s277 = smul.addr %s21, 5
          %s278 = smul.addr %s277, 4
          %s279 = scalar_lea.hbm %s0, %s278
          %s281 = sshll.u32 %s279, 4
          %s282 = int_to_ptr.hbm [resolvable:$true] %s281
          %s283 = sshll.u32 %s274, 4
          %s284 = int_to_ptr.vmem [resolvable:$true] %s283
          %286 = dma.hbm_to_vmem [thread:$0]  %s282, 320, %s284, %s271
        $region40: #{tpu_custom_call.1} parent=35 // pred_fallthru
          _
        // Predicated region
        $region41: #{tpu_custom_call.1} parent=35 // pred_check
          %p287 = pneg %p172
        $region42: #{tpu_custom_call.1} parent=35 // pred_check_branch
          %289 = sbr.rel (%p287) target = $region44
        $region43: #{tpu_custom_call.1} parent=35 // pred_region
          %p290 = scmp.lt.s32.totalorder %s21, 1
          %s291 = scalar_select %p290, %s21, 1
          %s292 = scalar_lea.vmem %s6, %s291
        $region44: #{tpu_custom_call.1} parent=35 // pred_fallthru
          _
      $region36: #{tpu_custom_call.1} parent=5 // pred_fallthru
        _
      %p293 = scmp.le.s32.totalorder 1, %s21
      %p294 = scmp.lt.s32.totalorder %s21, 3
      %p295 = pnand %p293, %p294
      %p296 = pneg %p295
      // Predicated region
      $region45: #{tpu_custom_call.1} parent=5 // pred_check
        _
      $region46: #{tpu_custom_call.1} parent=5 // pred_check_branch
        %298 = sbr.rel (%p295) target = $region48
      $region47: #{tpu_custom_call.1} parent=5 // pred_region
        %s299 = ssub.s32 %s21, 1
        %s300 = sand.u32 %s34, 1
        %s301 = scalar_lea.sflag [#allocation3], %s300
        %s302 = sand.u32 %s34, 1
        %s303 = smul.addr %s302, 20
        %s304 = scalar_lea.vmem [#allocation2], %s303
        // Predicated region
        $region49: #{tpu_custom_call.1} parent=47 // pred_check
          %p305 = pneg %p47
        $region50: #{tpu_custom_call.1} parent=47 // pred_check_branch
          %307 = sbr.rel (%p305) target = $region52
        $region51: #{tpu_custom_call.1} parent=47 // pred_region
          %309 = dma.done %s301, 320
        $region52: #{tpu_custom_call.1} parent=47 // pred_fallthru
          _
        // Predicated region
        $region53: #{tpu_custom_call.1} parent=47 // pred_check
          %p310 = pneg %p68
        $region54: #{tpu_custom_call.1} parent=47 // pred_check_branch
          %312 = sbr.rel (%p310) target = $region56
        $region55: #{tpu_custom_call.1} parent=47 // pred_region
          %314 = dma.done [#allocation6], 5120
        $region56: #{tpu_custom_call.1} parent=47 // pred_fallthru
          _
        // Predicated region
        $region57: #{tpu_custom_call.1} parent=47 // pred_check
          %p315 = pneg %p110
        $region58: #{tpu_custom_call.1} parent=47 // pred_check_branch
          %317 = sbr.rel (%p315) target = $region60
        $region59: #{tpu_custom_call.1} parent=47 // pred_region
          %319 = dma.done [#allocation6], 128
        $region60: #{tpu_custom_call.1} parent=47 // pred_fallthru
          _
        // Predicated region
        $region61: #{tpu_custom_call.1} parent=47 // pred_check
          %p320 = pneg %p131
        $region62: #{tpu_custom_call.1} parent=47 // pred_check_branch
          %322 = sbr.rel (%p320) target = $region64
        $region63: #{tpu_custom_call.1} parent=47 // pred_region
          %324 = dma.done [#allocation9], 16
        $region64: #{tpu_custom_call.1} parent=47 // pred_fallthru
          _
        %s325 = sand.u32 %s34, 1
        %s326 = scalar_lea.sflag [#allocation3], %s325
        %s327 = sand.u32 %s34, 1
        %s328 = smul.addr %s327, 20
        %s329 = scalar_lea.vmem [#allocation2], %s328
        %p330 = pneg %p47
        %p331 = pneg %p44
        %p332 = pneg %p68
        %p333 = pneg %p65
        %p334 = pneg %p89
        %p335 = pneg %p86
        %p336 = pneg %p110
        %p337 = pneg %p107
        %p338 = pneg %p131
        %p339 = pneg %p128
        %p340 = pneg %p152
        %p341 = pneg %p149
        %p342 = scmp.lt.s32.totalorder %s26, 1
        %s343 = scalar_select %p342, %s26, 1
        %s344 = scalar_lea.vmem %s6, %s343
        %p345 = pneg %p178
        %p346 = pneg %p175
        %p347 = pneg %p204
        %p348 = pneg %p201
        %s349 = sand.u32 %s191, 1
        %s350 = scalar_lea.sflag [#allocation4], %s349
        %s351 = sand.u32 %s191, 1
        %s352 = smul.addr %s351, 8
        %s353 = scalar_lea.vmem [#allocation10], %s352
        %p354 = scmp.lt.s32.totalorder %s26, 1
        %s355 = scalar_select %p354, %s26, 1
        %s356 = scalar_lea.vmem %s6, %s355
        %v357 = vld [vmem:[%s304] sm:$0xff]
        %v358 = vld [vmem:[%s304 + $0x8] sm:$0xff]
        %v359 = vld [vmem:[%s304 + $0x10] sm:$0xf]
        %v360 = vld [vmem:[#allocation5] sm:$0xf]
        %v361 = vld [vmem:[#allocation5 + $0x4] sm:$0xf]
        %v362 = vld [vmem:[#allocation5 + $0x8] sm:$0xf]
        %v363 = vld [vmem:[#allocation5 + $0xc] sm:$0xf]
        %v364 = vld [vmem:[#allocation5 + $0x10] sm:$0xf]
        %v365 = vld [vmem:[#allocation5 + $0x14] sm:$0xf]
        %v366 = vld [vmem:[#allocation5 + $0x18] sm:$0xf]
        %v367 = vld [vmem:[#allocation5 + $0x1c] sm:$0xf]
        %v368 = vld [vmem:[#allocation5 + $0x20] sm:$0xf]
        %v369 = vld [vmem:[#allocation5 + $0x24] sm:$0xf]
        %v370 = vld [vmem:[#allocation5 + $0x28] sm:$0xf]
        %v371 = vld [vmem:[#allocation5 + $0x2c] sm:$0xf]
        %v372 = vld [vmem:[#allocation5 + $0x30] sm:$0xf]
        %v373 = vld [vmem:[#allocation5 + $0x34] sm:$0xf]
        %v374 = vld [vmem:[#allocation5 + $0x38] sm:$0xf]
        %v375 = vld [vmem:[#allocation5 + $0x3c] sm:$0xf]
        %v376 = vld [vmem:[#allocation5 + $0x40] sm:$0xf]
        %v377 = vld [vmem:[#allocation5 + $0x44] sm:$0xf]
        %v378 = vld [vmem:[#allocation5 + $0x48] sm:$0xf]
        %v379 = vld [vmem:[#allocation5 + $0x4c] sm:$0xf]
        %v380 = vld [vmem:[#allocation5 + $0x50] sm:$0xf]
        %v381 = vld [vmem:[#allocation5 + $0x54] sm:$0xf]
        %v382 = vld [vmem:[#allocation5 + $0x58] sm:$0xf]
        %v383 = vld [vmem:[#allocation5 + $0x5c] sm:$0xf]
        %v384 = vld [vmem:[#allocation5 + $0x60] sm:$0xf]
        %v385 = vld [vmem:[#allocation5 + $0x64] sm:$0xf]
        %v386 = vld [vmem:[#allocation5 + $0x68] sm:$0xf]
        %v387 = vld [vmem:[#allocation5 + $0x6c] sm:$0xf]
        %v388 = vld [vmem:[#allocation5 + $0x70] sm:$0xf]
        %v389 = vld [vmem:[#allocation5 + $0x74] sm:$0xf]
        %v390 = vld [vmem:[#allocation5 + $0x78] sm:$0xf]
        %v391 = vld [vmem:[#allocation5 + $0x7c] sm:$0xf]
        %v392 = vld [vmem:[#allocation5 + $0x80] sm:$0xf]
        %v393 = vld [vmem:[#allocation5 + $0x84] sm:$0xf]
        %v394 = vld [vmem:[#allocation5 + $0x88] sm:$0xf]
        %v395 = vld [vmem:[#allocation5 + $0x8c] sm:$0xf]
        %v396 = vld [vmem:[#allocation5 + $0x90] sm:$0xf]
        %v397 = vld [vmem:[#allocation5 + $0x94] sm:$0xf]
        %v398 = vld [vmem:[#allocation5 + $0x98] sm:$0xf]
        %v399 = vld [vmem:[#allocation5 + $0x9c] sm:$0xf]
        %v400 = vld [vmem:[#allocation5 + $0xa0] sm:$0xf]
        %v401 = vld [vmem:[#allocation5 + $0xa4] sm:$0xf]
        %v402 = vld [vmem:[#allocation5 + $0xa8] sm:$0xf]
        %v403 = vld [vmem:[#allocation5 + $0xac] sm:$0xf]
        %v404 = vld [vmem:[#allocation5 + $0xb0] sm:$0xf]
        %v405 = vld [vmem:[#allocation5 + $0xb4] sm:$0xf]
        %v406 = vld [vmem:[#allocation5 + $0xb8] sm:$0xf]
        %v407 = vld [vmem:[#allocation5 + $0xbc] sm:$0xf]
        %v408 = vld [vmem:[#allocation5 + $0xc0] sm:$0xf]
        %v409 = vld [vmem:[#allocation5 + $0xc4] sm:$0xf]
        %v410 = vld [vmem:[#allocation5 + $0xc8] sm:$0xf]
        %v411 = vld [vmem:[#allocation5 + $0xcc] sm:$0xf]
        %v412 = vld [vmem:[#allocation5 + $0xd0] sm:$0xf]
        %v413 = vld [vmem:[#allocation5 + $0xd4] sm:$0xf]
        %v414 = vld [vmem:[#allocation5 + $0xd8] sm:$0xf]
        %v415 = vld [vmem:[#allocation5 + $0xdc] sm:$0xf]
        %v416 = vld [vmem:[#allocation5 + $0xe0] sm:$0xf]
        %v417 = vld [vmem:[#allocation5 + $0xe4] sm:$0xf]
        %v418 = vld [vmem:[#allocation5 + $0xe8] sm:$0xf]
        %v419 = vld [vmem:[#allocation5 + $0xec] sm:$0xf]
        %v420 = vld [vmem:[#allocation5 + $0xf0] sm:$0xf]
        %v421 = vld [vmem:[#allocation5 + $0xf4] sm:$0xf]
        %v422 = vld [vmem:[#allocation5 + $0xf8] sm:$0xf]
        %v423 = vld [vmem:[#allocation5 + $0xfc] sm:$0xf]
        %v424 = vld [vmem:[#allocation5 + $0x100] sm:$0xf]
        %v425 = vld [vmem:[#allocation5 + $0x104] sm:$0xf]
        %v426 = vld [vmem:[#allocation5 + $0x108] sm:$0xf]
        %v427 = vld [vmem:[#allocation5 + $0x10c] sm:$0xf]
        %v428 = vld [vmem:[#allocation5 + $0x110] sm:$0xf]
        %v429 = vld [vmem:[#allocation5 + $0x114] sm:$0xf]
        %v430 = vld [vmem:[#allocation5 + $0x118] sm:$0xf]
        %v431 = vld [vmem:[#allocation5 + $0x11c] sm:$0xf]
        %v432 = vld [vmem:[#allocation5 + $0x120] sm:$0xf]
        %v433 = vld [vmem:[#allocation5 + $0x124] sm:$0xf]
        %v434 = vld [vmem:[#allocation5 + $0x128] sm:$0xf]
        %v435 = vld [vmem:[#allocation5 + $0x12c] sm:$0xf]
        %v436 = vld [vmem:[#allocation5 + $0x130] sm:$0xf]
        %v437 = vld [vmem:[#allocation5 + $0x134] sm:$0xf]
        %v438 = vld [vmem:[#allocation5 + $0x138] sm:$0xf]
        %v439 = vld [vmem:[#allocation5 + $0x13c] sm:$0xf]
        %v440 = vld [vmem:[%s2] sm:$0x1]
        %v442 = vperm.slane %v440, 0
        %v447 = vunpack.c.l.b16 %v357
        %v448 = vunpack.c.h.b16 %v357
        %v449 = vunpack.c.l.b16 %v358
        %v450 = vunpack.c.h.b16 %v358
        %v451 = vunpack.c.l.b16 %v359
        %v452 = vpack.c.b16 %v447, %v447
        %v453 = vpack.c.b16 %v448, %v448
        %v454 = vpack.c.b16 %v449, %v449
        %v455 = vpack.c.b16 %v450, %v450
        %v456 = vpack.c.b16 %v451, %v451
        %v542 = vunpack.c.l.b16 %v360
        %v543 = vunpack.c.l.b16 %v361
        %v544 = vunpack.c.l.b16 %v362
        %v545 = vunpack.c.l.b16 %v363
        %v546 = vunpack.c.l.b16 %v364
        %v547 = vunpack.c.l.b16 %v365
        %v548 = vunpack.c.l.b16 %v366
        %v549 = vunpack.c.l.b16 %v367
        %v550 = vunpack.c.l.b16 %v368
        %v551 = vunpack.c.l.b16 %v369
        %v552 = vunpack.c.l.b16 %v370
        %v553 = vunpack.c.l.b16 %v371
        %v554 = vunpack.c.l.b16 %v372
        %v555 = vunpack.c.l.b16 %v373
        %v556 = vunpack.c.l.b16 %v374
        %v557 = vunpack.c.l.b16 %v375
        %v558 = vunpack.c.l.b16 %v376
        %v559 = vunpack.c.l.b16 %v377
        %v560 = vunpack.c.l.b16 %v378
        %v561 = vunpack.c.l.b16 %v379
        %v562 = vunpack.c.l.b16 %v380
        %v563 = vunpack.c.l.b16 %v381
        %v564 = vunpack.c.l.b16 %v382
        %v565 = vunpack.c.l.b16 %v383
        %v566 = vunpack.c.l.b16 %v384
        %v567 = vunpack.c.l.b16 %v385
        %v568 = vunpack.c.l.b16 %v386
        %v569 = vunpack.c.l.b16 %v387
        %v570 = vunpack.c.l.b16 %v388
        %v571 = vunpack.c.l.b16 %v389
        %v572 = vunpack.c.l.b16 %v390
        %v573 = vunpack.c.l.b16 %v391
        %v574 = vunpack.c.l.b16 %v392
        %v575 = vunpack.c.l.b16 %v393
        %v576 = vunpack.c.l.b16 %v394
        %v577 = vunpack.c.l.b16 %v395
        %v578 = vunpack.c.l.b16 %v396
        %v579 = vunpack.c.l.b16 %v397
        %v580 = vunpack.c.l.b16 %v398
        %v581 = vunpack.c.l.b16 %v399
        %v582 = vunpack.c.l.b16 %v400
        %v583 = vunpack.c.l.b16 %v401
        %v584 = vunpack.c.l.b16 %v402
        %v585 = vunpack.c.l.b16 %v403
        %v586 = vunpack.c.l.b16 %v404
        %v587 = vunpack.c.l.b16 %v405
        %v588 = vunpack.c.l.b16 %v406
        %v589 = vunpack.c.l.b16 %v407
        %v590 = vunpack.c.l.b16 %v408
        %v591 = vunpack.c.l.b16 %v409
        %v592 = vunpack.c.l.b16 %v410
        %v593 = vunpack.c.l.b16 %v411
        %v594 = vunpack.c.l.b16 %v412
        %v595 = vunpack.c.l.b16 %v413
        %v596 = vunpack.c.l.b16 %v414
        %v597 = vunpack.c.l.b16 %v415
        %v598 = vunpack.c.l.b16 %v416
        %v599 = vunpack.c.l.b16 %v417
        %v600 = vunpack.c.l.b16 %v418
        %v601 = vunpack.c.l.b16 %v419
        %v602 = vunpack.c.l.b16 %v420
        %v603 = vunpack.c.l.b16 %v421
        %v604 = vunpack.c.l.b16 %v422
        %v605 = vunpack.c.l.b16 %v423
        %v606 = vunpack.c.l.b16 %v424
        %v607 = vunpack.c.l.b16 %v425
        %v608 = vunpack.c.l.b16 %v426
        %v609 = vunpack.c.l.b16 %v427
        %v610 = vunpack.c.l.b16 %v428
        %v611 = vunpack.c.l.b16 %v429
        %v612 = vunpack.c.l.b16 %v430
        %v613 = vunpack.c.l.b16 %v431
        %v614 = vunpack.c.l.b16 %v432
        %v615 = vunpack.c.l.b16 %v433
        %v616 = vunpack.c.l.b16 %v434
        %v617 = vunpack.c.l.b16 %v435
        %v618 = vunpack.c.l.b16 %v436
        %v619 = vunpack.c.l.b16 %v437
        %v620 = vunpack.c.l.b16 %v438
        %v621 = vunpack.c.l.b16 %v439
        %v622 = vpack.c.b16 %v543, %v542
        %v623 = vpack.c.b16 %v545, %v544
        %v624 = vpack.c.b16 %v547, %v546
        %v625 = vpack.c.b16 %v549, %v548
        %v626 = vpack.c.b16 %v551, %v550
        %v627 = vpack.c.b16 %v553, %v552
        %v628 = vpack.c.b16 %v555, %v554
        %v629 = vpack.c.b16 %v557, %v556
        %v630 = vpack.c.b16 %v559, %v558
        %v631 = vpack.c.b16 %v561, %v560
        %v632 = vpack.c.b16 %v563, %v562
        %v633 = vpack.c.b16 %v565, %v564
        %v634 = vpack.c.b16 %v567, %v566
        %v635 = vpack.c.b16 %v569, %v568
        %v636 = vpack.c.b16 %v571, %v570
        %v637 = vpack.c.b16 %v573, %v572
        %v638 = vpack.c.b16 %v575, %v574
        %v639 = vpack.c.b16 %v577, %v576
        %v640 = vpack.c.b16 %v579, %v578
        %v641 = vpack.c.b16 %v581, %v580
        %v642 = vpack.c.b16 %v583, %v582
        %v643 = vpack.c.b16 %v585, %v584
        %v644 = vpack.c.b16 %v587, %v586
        %v645 = vpack.c.b16 %v589, %v588
        %v646 = vpack.c.b16 %v591, %v590
        %v647 = vpack.c.b16 %v593, %v592
        %v648 = vpack.c.b16 %v595, %v594
        %v649 = vpack.c.b16 %v597, %v596
        %v650 = vpack.c.b16 %v599, %v598
        %v651 = vpack.c.b16 %v601, %v600
        %v652 = vpack.c.b16 %v603, %v602
        %v653 = vpack.c.b16 %v605, %v604
        %v654 = vpack.c.b16 %v607, %v606
        %v655 = vpack.c.b16 %v609, %v608
        %v656 = vpack.c.b16 %v611, %v610
        %v657 = vpack.c.b16 %v613, %v612
        %v658 = vpack.c.b16 %v615, %v614
        %v659 = vpack.c.b16 %v617, %v616
        %v660 = vpack.c.b16 %v619, %v618
        %v661 = vpack.c.b16 %v621, %v620
        %702 = vmatpush.bf16.msra.mxu0 %v629
        %703 = vmatpush.bf16.msra.mxu0 %v628
        %704 = vmatpush.bf16.msra.mxu0 %v627
        %705 = vmatpush.bf16.msra.mxu0 %v626
        %706 = vmatpush.bf16.msra.mxu0 %v625
        %707 = vmatpush.bf16.msra.mxu0 %v624
        %708 = vmatpush.bf16.msra.mxu0 %v623
        %709 = vmatpush.bf16.msra.mxu0 %v622
        %710 = vmatmul.bf16.gmra.mxu0 %v452
        %v711 = vpop.f32.mrf.mxu0
        %v712 = vadd.f32 %v442, %v711
        %v713 = vpop.f32.mrf.mxu0
        %714 = vdwg.mxu0
        %715 = vmatpush.bf16.msra.mxu0 %v637
        %716 = vmatpush.bf16.msra.mxu0 %v636
        %717 = vmatpush.bf16.msra.mxu0 %v635
        %718 = vmatpush.bf16.msra.mxu0 %v634
        %719 = vmatpush.bf16.msra.mxu0 %v633
        %720 = vmatpush.bf16.msra.mxu0 %v632
        %721 = vmatpush.bf16.msra.mxu0 %v631
        %722 = vmatpush.bf16.msra.mxu0 %v630
        %723 = vmatmul.bf16.gmra.mxu0 %v453
        %v724 = vpop.f32.mrf.mxu0
        %v725 = vadd.f32 %v712, %v724
        %v726 = vpop.f32.mrf.mxu0
        %727 = vdwg.mxu0
        %728 = vmatpush.bf16.msra.mxu0 %v645
        %729 = vmatpush.bf16.msra.mxu0 %v644
        %730 = vmatpush.bf16.msra.mxu0 %v643
        %731 = vmatpush.bf16.msra.mxu0 %v642
        %732 = vmatpush.bf16.msra.mxu0 %v641
        %733 = vmatpush.bf16.msra.mxu0 %v640
        %734 = vmatpush.bf16.msra.mxu0 %v639
        %735 = vmatpush.bf16.msra.mxu0 %v638
        %736 = vmatmul.bf16.gmra.mxu0 %v454
        %v737 = vpop.f32.mrf.mxu0
        %v738 = vadd.f32 %v725, %v737
        %v739 = vpop.f32.mrf.mxu0
        %740 = vdwg.mxu0
        %741 = vmatpush.bf16.msra.mxu0 %v653
        %742 = vmatpush.bf16.msra.mxu0 %v652
        %743 = vmatpush.bf16.msra.mxu0 %v651
        %744 = vmatpush.bf16.msra.mxu0 %v650
        %745 = vmatpush.bf16.msra.mxu0 %v649
        %746 = vmatpush.bf16.msra.mxu0 %v648
        %747 = vmatpush.bf16.msra.mxu0 %v647
        %748 = vmatpush.bf16.msra.mxu0 %v646
        %749 = vmatmul.bf16.gmra.mxu0 %v455
        %v750 = vpop.f32.mrf.mxu0
        %v751 = vadd.f32 %v738, %v750
        %v752 = vpop.f32.mrf.mxu0
        %753 = vdwg.mxu0
        %754 = vmatpush.bf16.msra.mxu0 %v661
        %755 = vmatpush.bf16.msra.mxu0 %v660
        %756 = vmatpush.bf16.msra.mxu0 %v659
        %757 = vmatpush.bf16.msra.mxu0 %v658
        %758 = vmatpush.bf16.msra.mxu0 %v657
        %759 = vmatpush.bf16.msra.mxu0 %v656
        %760 = vmatpush.bf16.msra.mxu0 %v655
        %761 = vmatpush.bf16.msra.mxu0 %v654
        %762 = vmatmul.bf16.gmra.mxu0 %v456
        %v763 = vpop.f32.mrf.mxu0
        %v764 = vadd.f32 %v751, %v763
        %v765 = vpop.f32.mrf.mxu0
        %766 = vdwg.mxu0
        %v767 = vld [vmem:[#allocation7] sm:$0xff]
        %v768 = vadd.f32 %v764, %v767
        %v769 = vlaneseq
        %v770 = vand.u32 %v769, 127
        %vm771 = vcmp.lt.s32.totalorder %v770, 32
        %v772 = vsel %vm771, 1, 0
        %v773 = vcvt.s32.f32 %v772
        %774 = vadd.xlane.f32.xlu0 %v768
        %v775 = vpop.xlane.xlu0 %774
        %v776 = vmul.f32 %v775, 0.03125
        %v777 = vsub.f32 %v768, %v776
        %v778 = vmul.f32 %v777, %v773
        %v779 = vmul.f32 %v778, %v778
        %780 = vadd.xlane.f32.xlu0 %v779
        %v781 = vpop.xlane.xlu0 %780
        %v782 = vmul.f32 %v781, 0.03125
        %v783 = vadd.f32 %v782, 1e-06
        %v784 = vrsqrt.pop %v783
        %v785 = vmul.f32 %v784, %v783
        %v786 = vmul.f32 %v785, %v784
        %v787 = vmul.f32 0.5, %v786
        %v788 = vsub.f32 1.5, %v787
        %v789 = vmul.f32 %v784, %v788
        %vm790 = vweird.f32 %v783
        %vm791 = vweird.f32 %v784
        %vm792 = vmor %vm790, %vm791
        %v793 = vsel %vm792, %v784, %v789
        %v794 = vmul.f32 %v778, %v793
        %v795 = vld [vmem:[#allocation8] sm:$0x1]
        %v797 = vperm.slane %v795, 0
        %v799 = vmul.f32 %v794, %v797
        %v800 = vld [vmem:[%s5] sm:$0x1]
        %v802 = vperm.slane %v800, 0
        %v804 = vadd.f32 %v799, %v802
        %v805 = vld [vmem:[%s356] sm:$0x1]
        %v807 = vperm.slane %v805, 0
        %v809 = vadd.f32 %v804, %v807
        %810 = vst [vmem:[%s353] sm:$0xff] %v809
        %s811 = sand.u32 %s191, 1
        %s812 = scalar_lea.sflag [#allocation4], %s811
        %s813 = sand.u32 %s191, 1
        %s814 = smul.addr %s813, 8
        %s815 = scalar_lea.vmem [#allocation10], %s814
        // Predicated region
        $region65: #{tpu_custom_call.1} parent=47 // pred_check
          %p816 = pneg %p201
        $region66: #{tpu_custom_call.1} parent=47 // pred_check_branch
          %818 = sbr.rel (%p816) target = $region68
        $region67: #{tpu_custom_call.1} parent=47 // pred_region
          %820 = vsyncadd %s812, 0
          %s821 = smul.addr %s26, 8
          %s822 = scalar_lea.hbm %s7, %s821
          %s824 = sshll.u32 %s815, 4
          %s825 = int_to_ptr.vmem [resolvable:$true] %s824
          %s826 = sshll.u32 %s822, 4
          %s827 = int_to_ptr.hbm [resolvable:$true] %s826
          %829 = dma.vmem_to_hbm [thread:$0]  %s825, 128, %s827, %s812
        $region68: #{tpu_custom_call.1} parent=47 // pred_fallthru
          _
      $region48: #{tpu_custom_call.1} parent=5 // pred_fallthru
        _
      %p830 = scmp.le.s32.totalorder 2, %s21
      // Predicated region
      $region69: #{tpu_custom_call.1} parent=5 // pred_check
        %p831 = pneg %p830
      $region70: #{tpu_custom_call.1} parent=5 // pred_check_branch
        %833 = sbr.rel (%p831) target = $region72
      $region71: #{tpu_custom_call.1} parent=5 // pred_region
        %s834 = ssub.s32 %s21, 2
        // Predicated region
        $region73: #{tpu_custom_call.1} parent=71 // pred_check
          %p835 = pneg %p207
        $region74: #{tpu_custom_call.1} parent=71 // pred_check_branch
          %837 = sbr.rel (%p835) target = $region76
        $region75: #{tpu_custom_call.1} parent=71 // pred_region
          %s838 = sand.u32 %s192, 1
          %s839 = scalar_lea.sflag [#allocation4], %s838
          %s840 = sand.u32 %s192, 1
          %s841 = smul.addr %s840, 8
          %s842 = scalar_lea.vmem [#allocation10], %s841
          %844 = dma.done %s839, 128
        $region76: #{tpu_custom_call.1} parent=71 // pred_fallthru
          _
      $region72: #{tpu_custom_call.1} parent=5 // pred_fallthru
        _
    $region6: #{tpu_custom_call.1} parent=1 // loop_footer
      %s25 = sadd.s32 1, %s21
    $region7: #{tpu_custom_call.1} parent=1 // loop_footer_branch
      %20 = sbr.rel target = $region3
    $region8: #{tpu_custom_call.1} parent=1 // loop_exit
      _
    %845 = vsyncpa [#allocation3], 1
    %s846 = scalar_lea.sflag [#allocation3], 1
    %847 = vsyncpa %s846, 1
    %848 = vsyncpa [#allocation6], 1
    %849 = vsyncpa [#allocation9], 1
    %850 = vsyncpa [#allocation4], 1
    %s851 = scalar_lea.sflag [#allocation4], 1
    %852 = vsyncpa %s851, 1

</llo_original>
